<compile_context>
chip_gen: v6e
topology: v6e:2x2x1
jax: 0.10.0
libtpu: 0.0.40
codegen_flags: <defaults>
</compile_context>

<pallas_src>
import functools

import jax
import jax.numpy as jnp
from jax.experimental import pallas as pl
from jax.experimental.pallas import tpu as pltpu


_LANE = 128


def _round_up(x, m):
    return (x + m - 1) // m * m


def _pad2d(x, rows, cols):
    r, c = x.shape
    if r == rows and c == cols:
        return x
    return jnp.pad(x, ((0, rows - r), (0, cols - c)))


# ----------------------------------------------------------------------------
# Generation-dependent VMEM budgets (feedback: raise budgets on 128 MiB parts)
# ----------------------------------------------------------------------------
def _vmem_budgets():
    cap = None
    try:
        info = pltpu.get_tpu_info()
        for name in ("vmem_capacity_bytes", "vmem_bytes", "vmem_capacity"):
            v = getattr(info, name, None)
            if isinstance(v, int) and v > 0:
                cap = v
                break
    except Exception:
        cap = None
    if cap is not None and cap >= 96 * 1024 * 1024:
        # v5e / v6e (128 MiB physical VMEM): keep more problems on the zero-overhead
        # fast path and allow larger resident RHS strips; leave headroom for Mosaic
        # internal scratch / double-buffering.
        return {"fast": 48 << 20, "rhs": 24 << 20, "limit": 100 << 20}
    # v7x (64 MiB physical) or unknown generation: conservative, known-good numbers.
    return {"fast": 16 << 20, "rhs": 8 << 20, "limit": 48 << 20}


_BUDGETS = _vmem_budgets()


def _pick_tile(dim):
    """Largest tile in {512, 256, 128} that exactly divides the 128-rounded dim.

    Dropping 384 avoids ragged 128-wide passes on the 256x256 MXUs (v6e/v7x); requiring
    exact divisors means the tiled path never pads beyond the 128-multiple padding the
    GNN stack already hoists."""
    d = _round_up(dim, _LANE)
    for t in (512, 256):
        if d % t == 0:
            return t
    return _LANE


def _fast_row_tile(m_pad):
    """Row-block size for the fast path: a multiple of 128 that divides m_pad and gives
    >= 2 row blocks when possible (grid=(1,) could not use v7x's 2 TensorCores and had
    zero DMA/compute overlap)."""
    if m_pad <= _LANE:
        return m_pad
    for t in (512, 256, _LANE):
        if m_pad % t == 0 and m_pad // t >= 2:
            return t
    return _LANE


# ----------------------------------------------------------------------------
# Pallas kernels: out = A @ B (+ bias) (+ residual), f32 accumulation
# ----------------------------------------------------------------------------
def _fused_whole_kernel(*refs, has_bias, has_res):
    refs = list(refs)
    a_ref = refs.pop(0)
    b_ref = refs.pop(0)
    bias_ref = refs.pop(0) if has_bias else None
    res_ref = refs.pop(0) if has_res else None
    o_ref = refs.pop(0)

    acc = jnp.dot(a_ref[...], b_ref[...], preferred_element_type=jnp.float32)
    if has_bias:
        acc = acc + bias_ref[...].astype(jnp.float32)
    if has_res:
        acc = acc + res_ref[...].astype(jnp.float32)
    o_ref[...] = acc.astype(o_ref.dtype)


def _fused_tiled_kernel(*refs, has_bias, has_res, tk, rhs_resident):
    # grid = (j, i, k): reduction axis k innermost; j outermost so the resident RHS
    # strip (block index depends only on j) is DMA'd once per j, not once per step.
    refs = list(refs)
    a_ref = refs.pop(0)
    b_ref = refs.pop(0)
    bias_ref = refs.pop(0) if has_bias else None
    res_ref = refs.pop(0) if has_res else None
    o_ref = refs.pop(0)
    acc_ref = refs.pop(0)

    k = pl.program_id(2)

    @pl.when(k == 0)
    def _():
        acc_ref[...] = jnp.zeros_like(acc_ref)

    if rhs_resident:
        koff = pl.multiple_of(k * tk, tk)
        b_blk = b_ref[pl.ds(koff, tk), :]
    else:
        b_blk = b_ref[...]

    acc_ref[...] += jnp.dot(a_ref[...], b_blk, preferred_element_type=jnp.float32)

    @pl.when(k == pl.num_programs(2) - 1)
    def _():
        acc = acc_ref[...]
        if has_bias:
            acc = acc + bias_ref[...].astype(jnp.float32)
        if has_res:
            acc = acc + res_ref[...].astype(jnp.float32)
        o_ref[...] = acc.astype(o_ref.dtype)


# ----------------------------------------------------------------------------
# Wrapper: out[M, N] = a[M, K] @ b[K, N] (+ bias[1, N]) (+ residual[M, N])
#   bf16 operands, f32 MXU accumulation, bias/residual added in f32 in the epilogue.
#   Callers pre-cast / pre-pad the large operands so the casts/pads here are no-ops.
# ----------------------------------------------------------------------------
@functools.partial(jax.jit, static_argnames=("out_dtype", "force_tiled", "tiles"))
def fused_matmul(a, b, bias=None, residual=None, *, out_dtype=jnp.float32,
                 force_tiled=False, tiles=None):
    m, k = a.shape
    k2, n = b.shape
    assert k == k2, "contraction dims must match"

    a = a.astype(jnp.bfloat16)          # no-op when callers hoist the cast
    b = b.astype(jnp.bfloat16)
    has_bias = bias is not None
    has_res = residual is not None
    if has_bias:
        bias = bias.reshape(1, -1).astype(jnp.float32)

    out_itemsize = jnp.dtype(out_dtype).itemsize
    m128, k128, n128 = (_round_up(d, _LANE) for d in (m, k, n))

    # -------- fast path: whole problem resident in VMEM, 1-D parallel grid over M ----
    tm_f = _fast_row_tile(m128)
    fast_bytes = (2 * tm_f * k128 * 2          # A row blocks (double-buffered, bf16)
                  + 2 * k128 * n128 * 2        # resident RHS
                  + 2 * tm_f * n128 * out_itemsize)
    if has_bias:
        fast_bytes += 2 * n128 * 4
    if has_res:
        fast_bytes += 2 * tm_f * n128 * jnp.dtype(residual.dtype).itemsize

    if not force_tiled and fast_bytes <= _BUDGETS["fast"]:
        a_p = _pad2d(a, m128, k128)
        b_p = _pad2d(b, k128, n128)
        operands = [a_p, b_p]
        in_specs = [
            pl.BlockSpec((tm_f, k128), lambda i: (i, 0)),
            pl.BlockSpec((k128, n128), lambda i: (0, 0)),   # constant index: one DMA
        ]
        if has_bias:
            operands.append(_pad2d(bias, 1, n128))
            in_specs.append(pl.BlockSpec((1, n128), lambda i: (0, 0)))
        if has_res:
            operands.append(_pad2d(residual, m128, n128))
            in_specs.append(pl.BlockSpec((tm_f, n128), lambda i: (i, 0)))
        out = pl.pallas_call(
            functools.partial(_fused_whole_kernel, has_bias=has_bias, has_res=has_res),
            out_shape=jax.ShapeDtypeStruct((m128, n128), out_dtype),
            grid=(m128 // tm_f,),
            in_specs=in_specs,
            out_specs=pl.BlockSpec((tm_f, n128), lambda i: (i, 0)),
            compiler_params=pltpu.CompilerParams(
                dimension_semantics=("parallel",),
                vmem_limit_bytes=_BUDGETS["limit"],
            ),
        )(*operands)
        return out[:m, :n]

    # -------- tiled path: large tiles, reduction innermost, resident RHS strip -------
    if tiles is not None:
        tm, tk, tn = tiles
    else:
        tm, tk, tn = _pick_tile(m), _pick_tile(k), _pick_tile(n)
    mp, kp, np_ = _round_up(m, tm), _round_up(k, tk), _round_up(n, tn)
    a_p = _pad2d(a, mp, kp)
    b_p = _pad2d(b, kp, np_)

    rhs_resident = 2 * kp * tn * 2 <= _BUDGETS["rhs"]
    if rhs_resident:
        # RHS strip keyed to the OUTERMOST axis j: DMA'd once per j-block.
        # TODO(synk): pipeline_mode=pl.Buffered(1) here would halve its VMEM footprint.
        b_spec = pl.BlockSpec((kp, tn), lambda j, i, kk: (0, j))
    else:
        b_spec = pl.BlockSpec((tk, tn), lambda j, i, kk: (kk, j))

    operands = [a_p, b_p]
    in_specs = [pl.BlockSpec((tm, tk), lambda j, i, kk: (i, kk)), b_spec]
    if has_bias:
        operands.append(_pad2d(bias, 1, np_))
        in_specs.append(pl.BlockSpec((1, tn), lambda j, i, kk: (0, j)))
    if has_res:
        operands.append(_pad2d(residual, mp, np_))
        in_specs.append(pl.BlockSpec((tm, tn), lambda j, i, kk: (i, j)))

    grid = (np_ // tn, mp // tm, kp // tk)   # (j, i, k): reduction innermost

    out = pl.pallas_call(
        functools.partial(_fused_tiled_kernel, has_bias=has_bias, has_res=has_res,
                          tk=tk, rhs_resident=rhs_resident),
        out_shape=jax.ShapeDtypeStruct((mp, np_), out_dtype),
        grid_spec=pltpu.PrefetchScalarGridSpec(
            num_scalar_prefetch=0,
            grid=grid,
            in_specs=in_specs,
            out_specs=pl.BlockSpec((tm, tn), lambda j, i, kk: (i, j)),
            scratch_shapes=[pltpu.VMEM((tm, tn), jnp.float32)],
        ),
        compiler_params=pltpu.CompilerParams(
            dimension_semantics=("parallel", "parallel", "arbitrary"),
            vmem_limit_bytes=_BUDGETS["limit"],
        ),
    )(*operands)
    return out[:m, :n]


# ----------------------------------------------------------------------------
# Module classes (forward semantics of the reference GNN stack)
# ----------------------------------------------------------------------------
class BaseGNNNet:
    """Exact dispatch semantics of the reference BaseGNNNet."""

    def dataflow_forward(self, X, g, **kwargs):
        raise NotImplementedError

    def subgraph_forward(self, X, g, **kwargs):
        raise NotImplementedError

    def forward(self, X, g, **kwargs):
        if g["type"] == "dataflow":
            return self.dataflow_forward(X, g, **kwargs)
        elif g["type"] == "subgraph":
            return self.subgraph_forward(X, g, **kwargs)
        else:
            raise Exception("Unsupported graph type {}".format(g["type"]))

    __call__ = forward


class GCNConv:
    """Dense-adjacency equivalent of the reference GCNConv (sum aggregation):
         h = fea_map(x);   out = h + A @ h,   A[dst, src] = edge_weight.
    Operates on padded node-major (Np, B, C_p) activations; both matmuls run on the MXU
    through the fused Pallas kernel (bias / residual adds fused into the epilogue)."""

    def __init__(self, key, in_dim, out_dim):
        kw, kb = jax.random.split(key)
        bound = 1.0 / (in_dim ** 0.5)
        w = jax.random.uniform(kw, (out_dim, in_dim), minval=-bound, maxval=bound,
                               dtype=jnp.float32)
        bvec = jax.random.uniform(kb, (out_dim,), minval=-bound, maxval=bound,
                                  dtype=jnp.float32)
        self.in_dim, self.out_dim = in_dim, out_dim
        self.in_dim_p = _round_up(in_dim, _LANE)
        self.out_dim_p = _round_up(out_dim, _LANE)
        # Pre-transposed / pre-padded / pre-cast Linear weight and padded bias (hoisted
        # out of the per-call path).  Padded weight cols & bias entries are zero, so
        # padded feature columns stay exactly zero through the whole stack.
        self.weight_t = _pad2d(w.T, self.in_dim_p, self.out_dim_p).astype(jnp.bfloat16)
        self.bias_p = _pad2d(bvec.reshape(1, -1), 1, self.out_dim_p)      # f32
        # unpadded copies kept for the pure-JAX reference check
        self.weight, self.bias = w, bvec

    def __call__(self, x_nb, adj_bf16, *, out_dtype):
        np_nodes, bsz, cin_p = x_nb.shape
        assert cin_p == self.in_dim_p
        # fea_map (nn.Linear) with fused bias; bf16 activations out (halves writeback).
        h = fused_matmul(x_nb.reshape(np_nodes * bsz, cin_p), self.weight_t,
                         bias=self.bias_p, out_dtype=jnp.bfloat16)
        h_nf = h.reshape(np_nodes, bsz * self.out_dim_p)
        # message + sum-aggregate + update(): out = A @ h + h, residual fused in f32.
        out = fused_matmul(adj_bf16, h_nf, residual=h_nf, out_dtype=out_dtype)
        return out.reshape(np_nodes, bsz, self.out_dim_p)


class NodeGNN(BaseGNNNet):
    """Reference NodeGNN (gcn_type='gcn'): a stack of GCNConv layers on the subgraph."""

    def __init__(self, key, gcn_in_dim, gcn_dim, layer_num):
        assert layer_num >= 1
        keys = jax.random.split(key, layer_num)
        dims = [gcn_in_dim] + [gcn_dim] * layer_num
        self.convs = [GCNConv(keys[l], dims[l], dims[l + 1]) for l in range(layer_num)]

    def subgraph_forward(self, x, g, edge_weight=None):
        edge_index = g["edge_index"]            # (2, E)
        if edge_weight is None:
            edge_weight = g["edge_attr"]        # (E,), shared across the batch
        if edge_weight.ndim != 1:
            # TODO(synk): batched / EdgeGNN-gated edge weights ((B, E) / (B, E, 1))
            #             need a per-batch adjacency (block-diagonal matmuls).
            raise NotImplementedError("batched edge_weight not supported")
        src, dst = edge_index[0], edge_index[1]
        bsz, n, c = x.shape
        n_pad = _round_up(n, _LANE)
        c_pad = self.convs[0].in_dim_p

        # Hoisted ONCE per forward (feedback): dense propagation matrix built directly
        # at padded size and cast to bf16 a single time; reused by every layer.
        # Padded nodes have all-zero adjacency columns, so their (garbage) activations
        # never contaminate real nodes; they are sliced off at the end.
        adj = jnp.zeros((n_pad, n_pad), jnp.float32).at[dst, src].add(edge_weight)
        adj = adj.astype(jnp.bfloat16)

        # Hoisted layout change (feedback): node-major (N, B, C) for the whole stack;
        # pad node/feature dims once; cast to bf16 once.
        h = jnp.transpose(x, (1, 0, 2))
        h = jnp.pad(h, ((0, n_pad - n), (0, 0), (0, c_pad - c))).astype(jnp.bfloat16)

        n_layers = len(self.convs)
        for li, conv in enumerate(self.convs):
            last = li == n_layers - 1
            h = conv(h, adj, out_dtype=(x.dtype if last else jnp.bfloat16))

        h = h[:n, :, :self.convs[-1].out_dim]   # strip node/feature padding
        return jnp.transpose(h, (1, 0, 2))      # back to (B, N, C_out)


# TODO(synk): MyGATConv (per-edge sigmoid gating), EdgeGNN (edge-gate head), and the full
# HierSTModel wrapper (NBeatsEncoder / CLBlock / adv are not defined in the provided
# spec) are not implemented; NodeGNN + GCNConv above is the Pallas-accelerated GNN hot
# path that HierSTModel.forward drives.


if __name__ == "__main__":
    key = jax.random.PRNGKey(0)
    (k_x, k_a, k_xa, k_e1, k_e2, k_w, k_net, k_bias, k_res, _) = jax.random.split(key, 10)

    def ref_mm(a, b):  # same bf16-operand / f32-accumulate contract as the kernel
        return jnp.dot(a.astype(jnp.bfloat16).astype(jnp.float32),
                       b.astype(jnp.bfloat16).astype(jnp.float32))

    # ---- raw kernel: adjacency aggregation out = adj @ X (fast path, parallel grid) ----
    N, F = 256, 128
    X = jax.random.normal(k_x, (N, F), dtype=jnp.float32)
    adj = (jax.random.uniform(k_a, (N, N)) < 0.1).astype(jnp.float32)

    out_fast = fused_matmul(adj, X, out_dtype=jnp.float32)
    jax.block_until_ready(out_fast)
    ref = ref_mm(adj, X)
    assert out_fast.shape == (N, F)
    assert jnp.allclose(out_fast, ref, atol=1e-3, rtol=1e-3)

    # ---- tiled path with fused bias + residual epilogue (grid + accumulator) ----
    bias_v = jax.random.normal(k_bias, (F,), dtype=jnp.float32)
    resid = jax.random.normal(k_res, (N, F), dtype=jnp.float32)
    out_tiled = fused_matmul(adj, X, bias=bias_v, residual=resid,
                             out_dtype=jnp.float32, force_tiled=True,
                             tiles=(128, 128, 128))
    jax.block_until_ready(out_tiled)
    ref_t = ref + bias_v[None, :] + resid
    assert out_tiled.shape == (N, F)
    assert jnp.allclose(out_tiled, ref_t, atol=1e-2, rtol=1e-2)

    # ---- NodeGNN forward (subgraph branch); non-multiples of 128 exercise padding ----
    B, NN, C_IN, C_HID, E = 2, 200, 32, 48, 800
    x = jax.random.normal(k_xa, (B, NN, C_IN), dtype=jnp.float32)
    src = jax.random.randint(k_e1, (E,), 0, NN)
    dst = jax.random.randint(k_e2, (E,), 0, NN)
    edge_index = jnp.stack([src, dst], axis=0)
    edge_attr = jax.random.uniform(k_w, (E,), dtype=jnp.float32)

    net = NodeGNN(k_net, C_IN, C_HID, layer_num=2)
    g = {"type": "subgraph", "edge_index": edge_index, "edge_attr": edge_attr}
    out = net(x, g)
    jax.block_until_ready(out)
    assert out.shape == (B, NN, C_HID)

    # pure-JAX reference mirroring the kernel's bf16-operand / bf16-activation contract
    adj_d = jnp.zeros((NN, NN), jnp.float32).at[dst, src].add(edge_attr)
    href = x
    for li, conv in enumerate(net.convs):
        h = ref_mm(href.reshape(B * NN, -1), conv.weight.T) + conv.bias
        h = h.astype(jnp.bfloat16)                        # stored-activation rounding
        h = h.reshape(B, NN, conv.out_dim)
        agg = jnp.einsum(
            "ij,bjc->bic",
            adj_d.astype(jnp.bfloat16).astype(jnp.float32),
            h.astype(jnp.float32),
        )
        o = h.astype(jnp.float32) + agg
        href = o if li == len(net.convs) - 1 else o.astype(jnp.bfloat16)
    assert jnp.allclose(out, href, atol=5e-2, rtol=5e-2)

    # ---- dispatch semantics (matches reference) ----
    try:
        net(x, {"type": "bogus"})
        raise AssertionError("expected dispatch failure")
    except Exception as e:
        assert "Unsupported graph type" in str(e)

    try:
        net(x, {"type": "dataflow"})
        raise AssertionError("expected NotImplementedError")
    except NotImplementedError:
        pass

    print("KERNEL_OK")
</pallas_src>

<mosaic_0001>
module attributes {stable_mosaic.version = 11 : i64} {
  func.func @_fused_whole_kernel(%arg0: i32, %arg1: memref<128x256xbf16, #tpu.memory_space<vmem>>, %arg2: memref<256x128xbf16, #tpu.memory_space<vmem>>, %arg3: memref<128x128xf32, #tpu.memory_space<vmem>>) attributes {dimension_semantics = [#tpu.dimension_semantics<parallel>], iteration_bounds = array<i64: 2>, scalar_prefetch = 0 : i64, scratch_operands = 0 : i64, tpu.core_type = #tpu.core_type<tc>, window_params = [{transform_indices = @transform_0, window_bounds = array<i64: 128, 256>}, {pipeline_mode = #tpu.pipeline_mode<synchronous>, transform_indices = @transform_1, window_bounds = array<i64: 256, 128>}, {transform_indices = @transform_2, window_bounds = array<i64: 128, 128>}]} {
    %c0 = arith.constant 0 : index
    %c0_0 = arith.constant 0 : index
    %0 = vector.load %arg1[%c0, %c0_0] : memref<128x256xbf16, #tpu.memory_space<vmem>>, vector<128x256xbf16>
    %c0_1 = arith.constant 0 : index
    %c0_2 = arith.constant 0 : index
    %1 = vector.load %arg2[%c0_1, %c0_2] : memref<256x128xbf16, #tpu.memory_space<vmem>>, vector<256x128xbf16>
    %cst = arith.constant dense<0.000000e+00> : vector<128x128xf32>
    %2 = tpu.matmul %0, %1, %cst {dimension_numbers = #tpu.dot_dimension_numbers<[1], [0], [0], [1], [0, 0, 1, 1], [], []>} : vector<128x256xbf16>, vector<256x128xbf16>, vector<128x128xf32> -> vector<128x128xf32>
    %c0_3 = arith.constant 0 : index
    %c0_4 = arith.constant 0 : index
    %3 = vector.load %arg3[%c0_3, %c0_4] : memref<128x128xf32, #tpu.memory_space<vmem>>, vector<128x128xf32>
    tpu.vector_store %arg3[%c0_3, %c0_4], %2 {strides = array<i32>} : memref<128x128xf32, #tpu.memory_space<vmem>>, vector<128x128xf32>,
    return
  }
  func.func @transform_0(%arg0: i32) -> (i32, i32) {
    %c0_i32 = arith.constant 0 : i32
    %c0_i32_0 = arith.constant 0 : i32
    return %arg0, %c0_i32 : i32, i32
  }
  func.func @transform_1(%arg0: i32) -> (i32, i32) {
    %c0_i32 = arith.constant 0 : i32
    %c0_i32_0 = arith.constant 0 : i32
    %c0_i32_1 = arith.constant 0 : i32
    return %c0_i32, %c0_i32_0 : i32, i32
  }
  func.func @transform_2(%arg0: i32) -> (i32, i32) {
    %c0_i32 = arith.constant 0 : i32
    %c0_i32_0 = arith.constant 0 : i32
    return %arg0, %c0_i32 : i32, i32
  }
}

</mosaic_0001>

<llo_original>
// kernel: fused_matmul.1
$region0: #{fused_matmul.1}
  #allocation0 [shape = 'u32[]', space=smem, size = 0x4, offset = 0x4, fixed_abs, tag = 'smem constant byte address 0x4 - core index']
  #allocation1 [shape = 'u32[144,128]{1,0:T(1,128)}', space=vmem, size = 0x12000, scoped, tag = 'internal scratch']
  %s0 = inlined_call_operand.vmem [shape: bf16[256,256], index: 0, kind: input, shape index: {}]
  %s1 = inlined_call_operand.vmem [shape: bf16[256,128], index: 1, kind: input, shape index: {}]
  %s2 = inlined_call_operand.hbm [shape: f32[256,128], index: 2, kind: output, shape index: {}]
  %s3 = sld [smem:[#allocation0]]
  $region41: #{fused_matmul.1} parent=0
    _
  %s5 = ssub.s32 1, %s3
  %s6 = scalar_select 0, %s5, %s3
  $region1: #{fused_matmul.1} parent=0
    #allocation2 [shape = 'u8[131072]{0}', space=vmem, size = 0x20000, scoped, tag = 'output window, operand 0']
    #allocation3 [shape = 's32[2]{0}', space=sflag, size = 0x8, scoped, tag = 'scoped memory for fused_matmul.1']
    %7 = vsyncpa [#allocation3], 0
    %s8 = scalar_lea.sflag [#allocation3], 1
    %9 = vsyncpa %s8, 0
    loop: start=0, step=1, limit=4
    $region2: #{fused_matmul.1} parent=1 // loop_pre_header
      _
    $region3: #{fused_matmul.1} parent=1 // loop_header
      %s11 = sphi 0, %s15
      %p12 = scmp.ge.s32.totalorder %s11, 4
      %s21 = sphi 0, %s23
      %s24 = sphi 0, %s21
      %s25 = sphi 0, %s24
      %s41 = sphi 0, %s25
      %s45 = sphi 0, %s45
      %s47 = sphi 0, %s45
      %s48 = sphi 0, %s47
      %s62 = sphi 0, %s48
      %s68 = sphi 0, %s70
      %s71 = sphi 0, %s68
      %s72 = sphi 0, %s71
      %s88 = sphi 0, %s72
    $region4: #{fused_matmul.1} parent=1 // loop_header_branch
      %14 = sbr.rel (%p12) target = $region8
    $region5: #{fused_matmul.1} parent=1 // loop_body
      %s16 = ssub.s32 %s11, 1
      %s17 = ssub.s32 %s11, 2
      %s18 = sadd.s32 %s11, 1
      %s19 = ssub.s32 %s11, %s18
      %p20 = scmp.eq.s32.totalorder %s19, 0
      %s22 = sadd.s32 %s21, 1
      %s23 = scalar_select %p20, %s21, %s22
      %p26 = pneg %p20
      %p27 = scmp.eq.s32.totalorder %s11, 1
      %p28 = por %p26, %p27
      %p29 = scmp.ne.s32.totalorder %s21, %s24
      %p30 = scmp.eq.s32.totalorder %s11, 0
      %p31 = por %p29, %p30
      %p32 = scmp.ne.s32.totalorder %s21, %s24
      %p33 = scmp.eq.s32.totalorder %s16, 1
      %p34 = por %p32, %p33
      %p35 = scmp.ne.s32.totalorder %s24, %s25
      %p36 = scmp.eq.s32.totalorder %s16, 0
      %p37 = por %p35, %p36
      %p38 = scmp.ne.s32.totalorder %s24, %s25
      %p39 = scmp.eq.s32.totalorder %s17, 1
      %p40 = por %p38, %p39
      %p42 = scmp.ne.s32.totalorder %s25, %s41
      %p43 = scmp.eq.s32.totalorder %s17, 0
      %p44 = por %p42, %p43
      %s46 = sadd.s32 %s45, 1
      %p49 = scmp.eq.s32.totalorder %s11, 1
      %p50 = scmp.ne.s32.totalorder %s45, %s47
      %p51 = scmp.eq.s32.totalorder %s11, 0
      %p52 = por %p50, %p51
      %p53 = scmp.ne.s32.totalorder %s45, %s47
      %p54 = scmp.eq.s32.totalorder %s16, 1
      %p55 = por %p53, %p54
      %p56 = scmp.ne.s32.totalorder %s47, %s48
      %p57 = scmp.eq.s32.totalorder %s16, 0
      %p58 = por %p56, %p57
      %p59 = scmp.ne.s32.totalorder %s47, %s48
      %p60 = scmp.eq.s32.totalorder %s17, 1
      %p61 = por %p59, %p60
      %p63 = scmp.ne.s32.totalorder %s48, %s62
      %p64 = scmp.eq.s32.totalorder %s17, 0
      %p65 = por %p63, %p64
      %s66 = ssub.s32 %s11, %s18
      %p67 = scmp.eq.s32.totalorder %s66, 0
      %s69 = sadd.s32 %s68, 1
      %s70 = scalar_select %p67, %s68, %s69
      %p73 = pneg %p67
      %p74 = scmp.eq.s32.totalorder %s11, 1
      %p75 = por %p73, %p74
      %p76 = scmp.ne.s32.totalorder %s68, %s71
      %p77 = scmp.eq.s32.totalorder %s11, 0
      %p78 = por %p76, %p77
      %p79 = scmp.ne.s32.totalorder %s68, %s71
      %p80 = scmp.eq.s32.totalorder %s16, 1
      %p81 = por %p79, %p80
      %p82 = scmp.ne.s32.totalorder %s71, %s72
      %p83 = scmp.eq.s32.totalorder %s16, 0
      %p84 = por %p82, %p83
      %p85 = scmp.ne.s32.totalorder %s71, %s72
      %p86 = scmp.eq.s32.totalorder %s17, 1
      %p87 = por %p85, %p86
      %p89 = scmp.ne.s32.totalorder %s72, %s88
      %p90 = scmp.eq.s32.totalorder %s17, 0
      %p91 = por %p89, %p90
      %p92 = scmp.le.s32.totalorder 1, %s11
      %p93 = scmp.lt.s32.totalorder %s11, 3
      %p94 = pnand %p92, %p93
      %p95 = pneg %p94
      // Predicated region
      $region9: #{fused_matmul.1} parent=5 // pred_check
        _
      $region10: #{fused_matmul.1} parent=5 // pred_check_branch
        %97 = sbr.rel (%p94) target = $region12
      $region11: #{fused_matmul.1} parent=5 // pred_region
        %s98 = ssub.s32 %s11, 1
        // Predicated region
        $region13: #{fused_matmul.1} parent=11 // pred_check
          %p99 = pneg %p58
        $region14: #{fused_matmul.1} parent=11 // pred_check_branch
          %101 = sbr.rel (%p99) target = $region16
        $region15: #{fused_matmul.1} parent=11 // pred_region
          _
        $region16: #{fused_matmul.1} parent=11 // pred_fallthru
          _
      $region12: #{fused_matmul.1} parent=5 // pred_fallthru
        _
      %p102 = scmp.lt.s32.totalorder %s11, 2
      // Predicated region
      $region17: #{fused_matmul.1} parent=5 // pred_check
        %p103 = pneg %p102
      $region18: #{fused_matmul.1} parent=5 // pred_check_branch
        %105 = sbr.rel (%p103) target = $region20
      $region19: #{fused_matmul.1} parent=5 // pred_region
        // Predicated region
        $region21: #{fused_matmul.1} parent=19 // pred_check
          %p106 = pneg %p31
        $region22: #{fused_matmul.1} parent=19 // pred_check_branch
          %108 = sbr.rel (%p106) target = $region24
        $region23: #{fused_matmul.1} parent=19 // pred_region
          %s109 = smul.u32 16, %s11
          %p110 = scmp.lt.s32.totalorder %s109, 31
          %s111 = scalar_select %p110, %s109, 31
          %s112 = smul.addr %s111, 2
          %s113 = smul.addr %s112, 4
          %s114 = scalar_lea.vmem %s0, %s113
          %s115 = smul.u32 16, %s11
        $region24: #{fused_matmul.1} parent=19 // pred_fallthru
          _
      $region20: #{fused_matmul.1} parent=5 // pred_fallthru
        _
      %p116 = scmp.le.s32.totalorder 1, %s11
      %p117 = scmp.lt.s32.totalorder %s11, 3
      %p118 = pnand %p116, %p117
      %p119 = pneg %p118
      // Predicated region
      $region25: #{fused_matmul.1} parent=5 // pred_check
        _
      $region26: #{fused_matmul.1} parent=5 // pred_check_branch
        %121 = sbr.rel (%p118) target = $region28
      $region27: #{fused_matmul.1} parent=5 // pred_region
        %s122 = ssub.s32 %s11, 1
        %s123 = smul.u32 16, %s16
        %p124 = scmp.lt.s32.totalorder %s123, 31
        %s125 = scalar_select %p124, %s123, 31
        %s126 = smul.addr %s125, 2
        %s127 = smul.addr %s126, 4
        %s128 = scalar_lea.vmem %s0, %s127
        %p129 = pneg %p37
        %p130 = pneg %p34
        %p131 = pneg %p58
        %p132 = pneg %p55
        %p133 = pneg %p84
        %p134 = pneg %p81
        %s135 = sand.u32 %s71, 1
        %s136 = scalar_lea.sflag [#allocation3], %s135
        %s137 = sand.u32 %s71, 1
        %s138 = smul.addr %s137, 128
        %s139 = scalar_lea.vmem [#allocation2], %s138
        %s140 = smul.u32 16, %s16
        %p141 = scmp.lt.s32.totalorder %s140, 31
        %s142 = scalar_select %p141, %s140, 31
        %s143 = smul.addr %s142, 2
        %s144 = smul.addr %s143, 4
        %s145 = scalar_lea.vmem %s0, %s144
        %s146 = smul.u32 16, %s16
        %s147 = smul.u32 16, %s16
        %v149 = vld [vmem:[%s145] sm:$0xff]
        %v150 = vld [vmem:[%s145 + $0x8] sm:$0xff]
        %v151 = vld [vmem:[%s145 + $0x10] sm:$0xff]
        %v152 = vld [vmem:[%s145 + $0x18] sm:$0xff]
        %v153 = vld [vmem:[%s145 + $0x20] sm:$0xff]
        %v154 = vld [vmem:[%s145 + $0x28] sm:$0xff]
        %v155 = vld [vmem:[%s145 + $0x30] sm:$0xff]
        %v156 = vld [vmem:[%s145 + $0x38] sm:$0xff]
        %v157 = vld [vmem:[%s145 + $0x40] sm:$0xff]
        %v158 = vld [vmem:[%s145 + $0x48] sm:$0xff]
        %v159 = vld [vmem:[%s145 + $0x50] sm:$0xff]
        %v160 = vld [vmem:[%s145 + $0x58] sm:$0xff]
        %v161 = vld [vmem:[%s145 + $0x60] sm:$0xff]
        %v162 = vld [vmem:[%s145 + $0x68] sm:$0xff]
        %v163 = vld [vmem:[%s145 + $0x70] sm:$0xff]
        %v164 = vld [vmem:[%s145 + $0x78] sm:$0xff]
        %v165 = vld [vmem:[%s1] sm:$0xf]
        %v166 = vld [vmem:[%s1 + $0x4] sm:$0xf]
        %v167 = vld [vmem:[%s1 + $0x8] sm:$0xf]
        %v168 = vld [vmem:[%s1 + $0xc] sm:$0xf]
        %v169 = vld [vmem:[%s1 + $0x10] sm:$0xf]
        %v170 = vld [vmem:[%s1 + $0x14] sm:$0xf]
        %v171 = vld [vmem:[%s1 + $0x18] sm:$0xf]
        %v172 = vld [vmem:[%s1 + $0x1c] sm:$0xf]
        %v173 = vld [vmem:[%s1 + $0x20] sm:$0xf]
        %v174 = vld [vmem:[%s1 + $0x24] sm:$0xf]
        %v175 = vld [vmem:[%s1 + $0x28] sm:$0xf]
        %v176 = vld [vmem:[%s1 + $0x2c] sm:$0xf]
        %v177 = vld [vmem:[%s1 + $0x30] sm:$0xf]
        %v178 = vld [vmem:[%s1 + $0x34] sm:$0xf]
        %v179 = vld [vmem:[%s1 + $0x38] sm:$0xf]
        %v180 = vld [vmem:[%s1 + $0x3c] sm:$0xf]
        %v181 = vld [vmem:[%s1 + $0x40] sm:$0xf]
        %v182 = vld [vmem:[%s1 + $0x44] sm:$0xf]
        %v183 = vld [vmem:[%s1 + $0x48] sm:$0xf]
        %v184 = vld [vmem:[%s1 + $0x4c] sm:$0xf]
        %v185 = vld [vmem:[%s1 + $0x50] sm:$0xf]
        %v186 = vld [vmem:[%s1 + $0x54] sm:$0xf]
        %v187 = vld [vmem:[%s1 + $0x58] sm:$0xf]
        %v188 = vld [vmem:[%s1 + $0x5c] sm:$0xf]
        %v189 = vld [vmem:[%s1 + $0x60] sm:$0xf]
        %v190 = vld [vmem:[%s1 + $0x64] sm:$0xf]
        %v191 = vld [vmem:[%s1 + $0x68] sm:$0xf]
        %v192 = vld [vmem:[%s1 + $0x6c] sm:$0xf]
        %v193 = vld [vmem:[%s1 + $0x70] sm:$0xf]
        %v194 = vld [vmem:[%s1 + $0x74] sm:$0xf]
        %v195 = vld [vmem:[%s1 + $0x78] sm:$0xf]
        %v196 = vld [vmem:[%s1 + $0x7c] sm:$0xf]
        %v213 = vunpack.c.l.b16 %v149
        %v214 = vunpack.c.h.b16 %v149
        %v215 = vunpack.c.l.b16 %v150
        %v216 = vunpack.c.h.b16 %v150
        %v217 = vunpack.c.l.b16 %v151
        %v218 = vunpack.c.h.b16 %v151
        %v219 = vunpack.c.l.b16 %v152
        %v220 = vunpack.c.h.b16 %v152
        %v221 = vunpack.c.l.b16 %v153
        %v222 = vunpack.c.h.b16 %v153
        %v223 = vunpack.c.l.b16 %v154
        %v224 = vunpack.c.h.b16 %v154
        %v225 = vunpack.c.l.b16 %v155
        %v226 = vunpack.c.h.b16 %v155
        %v227 = vunpack.c.l.b16 %v156
        %v228 = vunpack.c.h.b16 %v156
        %v229 = vunpack.c.l.b16 %v157
        %v230 = vunpack.c.h.b16 %v157
        %v231 = vunpack.c.l.b16 %v158
        %v232 = vunpack.c.h.b16 %v158
        %v233 = vunpack.c.l.b16 %v159
        %v234 = vunpack.c.h.b16 %v159
        %v235 = vunpack.c.l.b16 %v160
        %v236 = vunpack.c.h.b16 %v160
        %v237 = vunpack.c.l.b16 %v161
        %v238 = vunpack.c.h.b16 %v161
        %v239 = vunpack.c.l.b16 %v162
        %v240 = vunpack.c.h.b16 %v162
        %v241 = vunpack.c.l.b16 %v163
        %v242 = vunpack.c.h.b16 %v163
        %v243 = vunpack.c.l.b16 %v164
        %v244 = vunpack.c.h.b16 %v164
        %v245 = vpack.c.b16 %v215, %v213
        %v246 = vpack.c.b16 %v216, %v214
        %v247 = vpack.c.b16 %v219, %v217
        %v248 = vpack.c.b16 %v220, %v218
        %v249 = vpack.c.b16 %v223, %v221
        %v250 = vpack.c.b16 %v224, %v222
        %v251 = vpack.c.b16 %v227, %v225
        %v252 = vpack.c.b16 %v228, %v226
        %v253 = vpack.c.b16 %v231, %v229
        %v254 = vpack.c.b16 %v232, %v230
        %v255 = vpack.c.b16 %v235, %v233
        %v256 = vpack.c.b16 %v236, %v234
        %v257 = vpack.c.b16 %v239, %v237
        %v258 = vpack.c.b16 %v240, %v238
        %v259 = vpack.c.b16 %v243, %v241
        %v260 = vpack.c.b16 %v244, %v242
        %v309 = vunpack.c.l.b16 %v165
        %v310 = vunpack.c.l.b16 %v166
        %v311 = vunpack.c.l.b16 %v167
        %v312 = vunpack.c.l.b16 %v168
        %v313 = vunpack.c.l.b16 %v169
        %v314 = vunpack.c.l.b16 %v170
        %v315 = vunpack.c.l.b16 %v171
        %v316 = vunpack.c.l.b16 %v172
        %v317 = vunpack.c.l.b16 %v173
        %v318 = vunpack.c.l.b16 %v174
        %v319 = vunpack.c.l.b16 %v175
        %v320 = vunpack.c.l.b16 %v176
        %v321 = vunpack.c.l.b16 %v177
        %v322 = vunpack.c.l.b16 %v178
        %v323 = vunpack.c.l.b16 %v179
        %v324 = vunpack.c.l.b16 %v180
        %v325 = vunpack.c.l.b16 %v181
        %v326 = vunpack.c.l.b16 %v182
        %v327 = vunpack.c.l.b16 %v183
        %v328 = vunpack.c.l.b16 %v184
        %v329 = vunpack.c.l.b16 %v185
        %v330 = vunpack.c.l.b16 %v186
        %v331 = vunpack.c.l.b16 %v187
        %v332 = vunpack.c.l.b16 %v188
        %v333 = vunpack.c.l.b16 %v189
        %v334 = vunpack.c.l.b16 %v190
        %v335 = vunpack.c.l.b16 %v191
        %v336 = vunpack.c.l.b16 %v192
        %v337 = vunpack.c.l.b16 %v193
        %v338 = vunpack.c.l.b16 %v194
        %v339 = vunpack.c.l.b16 %v195
        %v340 = vunpack.c.l.b16 %v196
        %v341 = vpack.c.b16 %v310, %v309
        %v342 = vpack.c.b16 %v312, %v311
        %v343 = vpack.c.b16 %v314, %v313
        %v344 = vpack.c.b16 %v316, %v315
        %v345 = vpack.c.b16 %v318, %v317
        %v346 = vpack.c.b16 %v320, %v319
        %v347 = vpack.c.b16 %v322, %v321
        %v348 = vpack.c.b16 %v324, %v323
        %v349 = vpack.c.b16 %v326, %v325
        %v350 = vpack.c.b16 %v328, %v327
        %v351 = vpack.c.b16 %v330, %v329
        %v352 = vpack.c.b16 %v332, %v331
        %v353 = vpack.c.b16 %v334, %v333
        %v354 = vpack.c.b16 %v336, %v335
        %v355 = vpack.c.b16 %v338, %v337
        %v356 = vpack.c.b16 %v340, %v339
        %373 = vmatprep.subr.bf16.mxu0 0
        %374 = vmatpush1.bf16.msra.mxu0 %v348
        %375 = vmatprep.subr.bf16.mxu0 0
        %376 = vmatpush1.bf16.msra.mxu0 %v347
        %377 = vmatprep.subr.bf16.mxu0 0
        %378 = vmatpush1.bf16.msra.mxu0 %v346
        %379 = vmatprep.subr.bf16.mxu0 0
        %380 = vmatpush1.bf16.msra.mxu0 %v345
        %381 = vmatprep.subr.bf16.mxu0 0
        %382 = vmatpush1.bf16.msra.mxu0 %v344
        %383 = vmatprep.subr.bf16.mxu0 0
        %384 = vmatpush1.bf16.msra.mxu0 %v343
        %385 = vmatprep.subr.bf16.mxu0 0
        %386 = vmatpush1.bf16.msra.mxu0 %v342
        %387 = vmatprep.subr.bf16.mxu0 0
        %388 = vmatpush1.bf16.msra.mxu0 %v341
        %389 = vmatprep.subr.bf16.mxu0 0
        %390 = vmatpush2.bf16.msra.mxu0 %v356
        %391 = vmatprep.subr.bf16.mxu0 0
        %392 = vmatpush2.bf16.msra.mxu0 %v355
        %393 = vmatprep.subr.bf16.mxu0 0
        %394 = vmatpush2.bf16.msra.mxu0 %v354
        %395 = vmatprep.subr.bf16.mxu0 0
        %396 = vmatpush2.bf16.msra.mxu0 %v353
        %397 = vmatprep.subr.bf16.mxu0 0
        %398 = vmatpush2.bf16.msra.mxu0 %v352
        %399 = vmatprep.subr.bf16.mxu0 0
        %400 = vmatpush2.bf16.msra.mxu0 %v351
        %401 = vmatprep.subr.bf16.mxu0 0
        %402 = vmatpush2.bf16.msra.mxu0 %v350
        %403 = vmatprep.subr.bf16.mxu0 0
        %404 = vmatpush2.bf16.msra.mxu0 %v349
        %405 = vmatprep.mubr.bf16.mxu0 %v246
        %406 = vmatmul.mubr.bf16.gmra.mxu0 %v245
        %v407 = vpop.f32.mrf.mxu0
        %v408 = vadd.f32 0.0, %v407
        %v409 = vpop.f32.mrf.mxu0
        %v410 = vpop.f32.mrf.mxu0
        %v411 = vadd.f32 0.0, %v410
        %v412 = vpop.f32.mrf.mxu0
        %413 = vmatprep.mubr.bf16.mxu0 %v248
        %414 = vmatmul.mubr.bf16.gmra.mxu0 %v247
        %v415 = vpop.f32.mrf.mxu0
        %v416 = vadd.f32 0.0, %v415
        %v417 = vpop.f32.mrf.mxu0
        %v418 = vpop.f32.mrf.mxu0
        %v419 = vadd.f32 0.0, %v418
        %v420 = vpop.f32.mrf.mxu0
        %421 = vmatprep.mubr.bf16.mxu0 %v250
        %422 = vmatmul.mubr.bf16.gmra.mxu0 %v249
        %v423 = vpop.f32.mrf.mxu0
        %v424 = vadd.f32 0.0, %v423
        %v425 = vpop.f32.mrf.mxu0
        %v426 = vpop.f32.mrf.mxu0
        %v427 = vadd.f32 0.0, %v426
        %v428 = vpop.f32.mrf.mxu0
        %429 = vmatprep.mubr.bf16.mxu0 %v252
        %430 = vmatmul.mubr.bf16.gmra.mxu0 %v251
        %v431 = vpop.f32.mrf.mxu0
        %v432 = vadd.f32 0.0, %v431
        %v433 = vpop.f32.mrf.mxu0
        %v434 = vpop.f32.mrf.mxu0
        %v435 = vadd.f32 0.0, %v434
        %v436 = vpop.f32.mrf.mxu0
        %437 = vmatprep.mubr.bf16.mxu0 %v254
        %438 = vmatmul.mubr.bf16.gmra.mxu0 %v253
        %v439 = vpop.f32.mrf.mxu0
        %v440 = vadd.f32 0.0, %v439
        %v441 = vpop.f32.mrf.mxu0
        %v442 = vpop.f32.mrf.mxu0
        %v443 = vadd.f32 0.0, %v442
        %v444 = vpop.f32.mrf.mxu0
        %445 = vmatprep.mubr.bf16.mxu0 %v256
        %446 = vmatmul.mubr.bf16.gmra.mxu0 %v255
        %v447 = vpop.f32.mrf.mxu0
        %v448 = vadd.f32 0.0, %v447
        %v449 = vpop.f32.mrf.mxu0
        %v450 = vpop.f32.mrf.mxu0
        %v451 = vadd.f32 0.0, %v450
        %v452 = vpop.f32.mrf.mxu0
        %453 = vmatprep.mubr.bf16.mxu0 %v258
        %454 = vmatmul.mubr.bf16.gmra.mxu0 %v257
        %v455 = vpop.f32.mrf.mxu0
        %v456 = vadd.f32 0.0, %v455
        %v457 = vpop.f32.mrf.mxu0
        %v458 = vpop.f32.mrf.mxu0
        %v459 = vadd.f32 0.0, %v458
        %v460 = vpop.f32.mrf.mxu0
        %461 = vmatprep.mubr.bf16.mxu0 %v260
        %462 = vmatmul.mubr.bf16.gmra.mxu0 %v259
        %v463 = vpop.f32.mrf.mxu0
        %v464 = vadd.f32 0.0, %v463
        %v465 = vpop.f32.mrf.mxu0
        %v466 = vpop.f32.mrf.mxu0
        %v467 = vadd.f32 0.0, %v466
        %v468 = vpop.f32.mrf.mxu0
        %469 = vdwg.mxu0
        %470 = vst [vmem:[%s139] sm:$0xff] %v408
        %471 = vst [vmem:[%s139 + $0x8] sm:$0xff] %v411
        %472 = vst [vmem:[%s139 + $0x10] sm:$0xff] %v416
        %473 = vst [vmem:[%s139 + $0x18] sm:$0xff] %v419
        %474 = vst [vmem:[%s139 + $0x20] sm:$0xff] %v424
        %475 = vst [vmem:[%s139 + $0x28] sm:$0xff] %v427
        %476 = vst [vmem:[%s139 + $0x30] sm:$0xff] %v432
        %477 = vst [vmem:[%s139 + $0x38] sm:$0xff] %v435
        %478 = vst [vmem:[%s139 + $0x40] sm:$0xff] %v440
        %479 = vst [vmem:[%s139 + $0x48] sm:$0xff] %v443
        %480 = vst [vmem:[%s139 + $0x50] sm:$0xff] %v448
        %481 = vst [vmem:[%s139 + $0x58] sm:$0xff] %v451
        %482 = vst [vmem:[%s139 + $0x60] sm:$0xff] %v456
        %483 = vst [vmem:[%s139 + $0x68] sm:$0xff] %v459
        %484 = vst [vmem:[%s139 + $0x70] sm:$0xff] %v464
        %485 = vst [vmem:[%s139 + $0x78] sm:$0xff] %v467
        %s486 = sand.u32 %s71, 1
        %s487 = scalar_lea.sflag [#allocation3], %s486
        %s488 = sand.u32 %s71, 1
        %s489 = smul.addr %s488, 128
        %s490 = scalar_lea.vmem [#allocation2], %s489
        // Predicated region
        $region29: #{fused_matmul.1} parent=27 // pred_check
          %p491 = pneg %p81
        $region30: #{fused_matmul.1} parent=27 // pred_check_branch
          %493 = sbr.rel (%p491) target = $region32
        $region31: #{fused_matmul.1} parent=27 // pred_region
          %s494 = smul.u32 16, %s16
          %s496 = ssub.s32 2048, 2048
          %497 = vsyncadd %s487, %s496
          %s498 = smul.addr %s494, 128
          %s499 = scalar_lea.hbm %s2, %s498
          %s500 = sshll.u32 %s490, 4
          %s501 = int_to_ptr.vmem [resolvable:$true] %s500
          %506 = dma.vmem_to_hbm [thread:$0]  %s501, 2048, %s499, %s487, 128, 128, 8
        $region32: #{fused_matmul.1} parent=27 // pred_fallthru
          _
      $region28: #{fused_matmul.1} parent=5 // pred_fallthru
        _
      %p507 = scmp.le.s32.totalorder 2, %s11
      // Predicated region
      $region33: #{fused_matmul.1} parent=5 // pred_check
        %p508 = pneg %p507
      $region34: #{fused_matmul.1} parent=5 // pred_check_branch
        %510 = sbr.rel (%p508) target = $region36
      $region35: #{fused_matmul.1} parent=5 // pred_region
        %s511 = ssub.s32 %s11, 2
        // Predicated region
        $region37: #{fused_matmul.1} parent=35 // pred_check
          %p512 = pneg %p87
        $region38: #{fused_matmul.1} parent=35 // pred_check_branch
          %514 = sbr.rel (%p512) target = $region40
        $region39: #{fused_matmul.1} parent=35 // pred_region
          %s515 = sand.u32 %s72, 1
          %s516 = scalar_lea.sflag [#allocation3], %s515
          %s517 = sand.u32 %s72, 1
          %s518 = smul.addr %s517, 128
          %s519 = scalar_lea.vmem [#allocation2], %s518
          %520 = dma.done %s516, 2048
        $region40: #{fused_matmul.1} parent=35 // pred_fallthru
          _
      $region36: #{fused_matmul.1} parent=5 // pred_fallthru
        _
    $region6: #{fused_matmul.1} parent=1 // loop_footer
      %s15 = sadd.s32 1, %s11
    $region7: #{fused_matmul.1} parent=1 // loop_footer_branch
      %10 = sbr.rel target = $region3
    $region8: #{fused_matmul.1} parent=1 // loop_exit
      _
    %521 = vsyncpa [#allocation3], 1
    %s522 = scalar_lea.sflag [#allocation3], 1
    %523 = vsyncpa %s522, 1

</llo_original>
